<compile_context>
chip_gen: v5e
topology: v5e:2x2
jax: 0.10.0
libtpu: 0.0.40
codegen_flags: <defaults>
</compile_context>

<pallas_src>
import functools

import jax
import jax.numpy as jnp
from jax.experimental import pallas as pl
from jax.experimental.pallas import tpu as pltpu

# Sobel parameters (matches get_sobel_xy_parameters, weight shape (2, 1, 3, 3)).
SOBEL_GX = ((-1.0, 0.0, 1.0),
            (-2.0, 0.0, 2.0),
            (-1.0, 0.0, 1.0))
SOBEL_GY = ((-1.0, -2.0, -1.0),
            ( 0.0,  0.0,  0.0),
            ( 1.0,  2.0,  1.0))

# Per-pixel VMEM footprint used for block sizing:
#   double-buffered input (2*4B) + double-buffered output (2*8B)
#   + ~6 live full-block f32 temporaries (~24B)  ->  ~48B; budget 72B for slack.
_BYTES_PER_PIXEL = 72
_IO_BYTES_PER_PIXEL = 12          # 4B read + 8B written per pixel


def _sobel_flat_kernel(x_ref, o_ref, *, h: int, w: int, lp: int):
    """x_ref: (TB, Lp) f32 flattened images; o_ref: (TB, 2*Lp) -> [gx | gy]."""
    l = h * w
    x = x_ref[...]                                        # (TB, Lp)

    # Border masks at (1, Lp); broadcast along sublanes inside jnp.where.
    p = jax.lax.broadcasted_iota(jnp.int32, (1, lp), 1)
    col = p % w                                           # column j (valid for p < l)
    has_left = col >= 1                                   # j-1 exists
    has_right = col <= (w - 2)                            # j+1 exists
    has_up = p >= w                                       # row i-1 exists
    has_down = p < (l - w)                                # row i+1 exists

    # Shift amounts (roll(x, s)[p] == x[p - s], i.e. jnp.roll semantics).
    sh_up = w % lp
    sh_dn = (lp - w) % lp

    # Horizontal neighbours via lane rolls; wrapped-in / out-of-image elements
    # are masked to the conv's zero padding.
    x_left = jnp.where(has_left, pltpu.roll(x, 1, axis=1), 0.0)        # x[i, j-1]
    x_right = jnp.where(has_right, pltpu.roll(x, lp - 1, axis=1), 0.0)  # x[i, j+1]

    # --- gx: horizontal [-1, 0, 1] then vertical [1, 2, 1] (finish before gy) ---
    ha = x_right - x_left
    ha_up = jnp.where(has_up, pltpu.roll(ha, sh_up, axis=1), 0.0)       # ha[i-1, j]
    ha_dn = jnp.where(has_down, pltpu.roll(ha, sh_dn, axis=1), 0.0)     # ha[i+1, j]
    o_ref[:, :lp] = ha_up + 2.0 * ha + ha_dn

    # --- gy: horizontal [1, 2, 1] then vertical [-1, 0, 1] ---
    hb = x_left + 2.0 * x + x_right
    hb_up = jnp.where(has_up, pltpu.roll(hb, sh_up, axis=1), 0.0)
    hb_dn = jnp.where(has_down, pltpu.roll(hb, sh_dn, axis=1), 0.0)
    o_ref[:, lp:] = hb_dn - hb_up


def _vmem_budgets():
    """(per-step byte budget, scoped vmem limit) chosen per chip generation."""
    cap = None
    try:
        cap = getattr(pltpu.get_tpu_info(), "vmem_capacity_bytes", None)
    except Exception:
        cap = None
    if cap is not None and cap >= 96 * 1024 * 1024:        # v5e / v6e: 128 MiB VMEM
        return 48 * 1024 * 1024, 64 * 1024 * 1024
    # v7x (64 MiB per TC) or unknown: stay under the 32 MiB scoped default.
    return 24 * 1024 * 1024, 32 * 1024 * 1024


def _pick_batch_tile(n: int, lp: int, budget_bytes: int) -> int:
    """Batch rows per grid step: VMEM-bounded, sublane-aligned, pipeline-friendly."""
    bytes_per_row = _BYTES_PER_PIXEL * lp
    tb = max(1, budget_bytes // bytes_per_row)
    if tb >= n:
        # Whole batch fits in one step.  If there is enough work, split into
        # >=4 aligned steps (>=2 per v7x core, each >=~1 MiB of I/O) so input
        # DMA of step i+1 overlaps compute/writeback of step i.
        io_per_row = _IO_BYTES_PER_PIXEL * lp
        if n >= 32 and (n // 4) * io_per_row >= (1 << 20):
            return max(8, ((n // 4) // 8) * 8)
        return n
    if tb >= 8:
        return (tb // 8) * 8          # sublane-aligned block height
    # TODO(synk): very large single images want row tiling with a 1-row halo;
    # for now keep an 8-row block (full vreg sublane fill) and let the budget
    # be slightly conservative.
    return min(8, n)


def image_gradients(x: jax.Array) -> jax.Array:
    """Pallas equivalent of ImageGradientsLayer.forward.

    Args:  x: (N, 1, H, W)
    Returns: (N, 2, H, W) float32 (channel 0 = Sobel-x, channel 1 = Sobel-y).
    """
    n, c, h, w = x.shape
    assert c == 1, "ImageGradientsLayer expects a single input channel"
    x = x.astype(jnp.float32)

    l = h * w
    lp = -(-l // 128) * 128                       # lane-aligned flattened length

    x_flat = x.reshape(n, l)                      # contiguous collapse: no movement
    if lp != l:
        x_flat = jnp.pad(x_flat, ((0, 0), (0, lp - l)))

    budget, vmem_limit = _vmem_budgets()
    tb = _pick_batch_tile(n, lp, budget)
    grid = (pl.cdiv(n, tb),)
    kernel = functools.partial(_sobel_flat_kernel, h=h, w=w, lp=lp)

    out_flat = pl.pallas_call(
        kernel,
        out_shape=jax.ShapeDtypeStruct((n, 2 * lp), jnp.float32),
        grid=grid,
        in_specs=[pl.BlockSpec((tb, lp), lambda b: (b, 0))],
        out_specs=pl.BlockSpec((tb, 2 * lp), lambda b: (b, 0)),
        compiler_params=pltpu.CompilerParams(
            dimension_semantics=("parallel",),
            vmem_limit_bytes=vmem_limit,
        ),
        cost_estimate=pl.CostEstimate(
            flops=18 * n * h * w,
            transcendentals=0,
            bytes_accessed=_IO_BYTES_PER_PIXEL * n * h * w,
        ),
    )(x_flat)

    out = out_flat.reshape(n, 2, lp)
    if lp != l:
        out = out[:, :, :l]
    return out.reshape(n, 2, h, w)


def _reference(x: jax.Array) -> jax.Array:
    # Pure-JAX reference (lax.conv cross-correlation) for verification.
    wgt = jnp.stack([jnp.array(SOBEL_GX, jnp.float32),
                     jnp.array(SOBEL_GY, jnp.float32)], axis=0)[:, None]  # (2,1,3,3)
    return jax.lax.conv_general_dilated(
        x.astype(jnp.float32), wgt, window_strides=(1, 1),
        padding=((1, 1), (1, 1)),
        dimension_numbers=("NCHW", "OIHW", "NCHW"))


if __name__ == "__main__":
    key = jax.random.PRNGKey(0)
    N, C, H, W = 2, 1, 16, 16   # ImageGradientsLayer requires in_channels=1
    x = jax.random.normal(key, (N, C, H, W), dtype=jnp.float32)

    y = jax.block_until_ready(image_gradients(x))
    y_ref = _reference(x)

    assert y.shape == (N, 2, H, W)
    assert jnp.allclose(y, y_ref, atol=1e-5, rtol=1e-5)
    print("KERNEL_OK")
</pallas_src>

<mosaic_0001>
module attributes {stable_mosaic.version = 11 : i64} {
  func.func @_sobel_flat_kernel(%arg0: i32, %arg1: memref<2x256xf32, #tpu.memory_space<vmem>>, %arg2: memref<2x512xf32, #tpu.memory_space<vmem>>) attributes {dimension_semantics = [#tpu.dimension_semantics<parallel>], iteration_bounds = array<i64: 1>, scalar_prefetch = 0 : i64, scratch_operands = 0 : i64, tpu.core_type = #tpu.core_type<tc>, window_params = [{transform_indices = @transform_0, window_bounds = array<i64: 2, 256>}, {transform_indices = @transform_1, window_bounds = array<i64: 2, 512>}]} {
    %c0 = arith.constant 0 : index
    %c0_0 = arith.constant 0 : index
    %0 = vector.load %arg1[%c0, %c0_0] : memref<2x256xf32, #tpu.memory_space<vmem>>, vector<2x256xf32>
    %1 = tpu.iota {dimensions = array<i32: 1>} : vector<1x256xi32>
    %c16_i32 = arith.constant 16 : i32
    %c0_i32 = arith.constant 0 : i32
    %2 = arith.cmpi eq, %c16_i32, %c0_i32 : i32
    %c1_i32 = arith.constant 1 : i32
    %3 = arith.select %2, %c1_i32, %c16_i32 : i32
    %4 = vector.broadcast %3 : i32 to vector<1x256xi32>
    %5 = arith.remsi %1, %4 : vector<1x256xi32>
    %c0_i32_1 = arith.constant 0 : i32
    %6 = vector.broadcast %c0_i32_1 : i32 to vector<1x256xi32>
    %7 = arith.cmpi ne, %5, %6 : vector<1x256xi32>
    %c0_i32_2 = arith.constant 0 : i32
    %8 = vector.broadcast %c0_i32_2 : i32 to vector<1x256xi32>
    %9 = arith.cmpi slt, %5, %8 : vector<1x256xi32>
    %c0_i32_3 = arith.constant 0 : i32
    %10 = arith.cmpi slt, %3, %c0_i32_3 : i32
    %11 = vector.broadcast %10 : i1 to vector<1x256xi1>
    %12 = vector.broadcast %11 : vector<1x256xi1> to vector<1x256xi1>
    %13 = arith.xori %9, %12 : vector<1x256xi1>
    %14 = arith.andi %13, %7 : vector<1x256xi1>
    %15 = vector.broadcast %3 : i32 to vector<1x256xi32>
    %16 = arith.addi %5, %15 : vector<1x256xi32>
    %17 = arith.select %14, %16, %5 : vector<1x256xi1>, vector<1x256xi32>
    %c1_i32_4 = arith.constant 1 : i32
    %18 = vector.broadcast %c1_i32_4 : i32 to vector<1x256xi32>
    %19 = arith.cmpi sge, %17, %18 : vector<1x256xi32>
    %c14_i32 = arith.constant 14 : i32
    %20 = vector.broadcast %c14_i32 : i32 to vector<1x256xi32>
    %21 = arith.cmpi sle, %17, %20 : vector<1x256xi32>
    %c16_i32_5 = arith.constant 16 : i32
    %22 = vector.broadcast %c16_i32_5 : i32 to vector<1x256xi32>
    %23 = arith.cmpi sge, %1, %22 : vector<1x256xi32>
    %c240_i32 = arith.constant 240 : i32
    %24 = vector.broadcast %c240_i32 : i32 to vector<1x256xi32>
    %25 = arith.cmpi slt, %1, %24 : vector<1x256xi32>
    %c1_i32_6 = arith.constant 1 : i32
    %26 = tpu.dynamic_rotate %0 by %c1_i32_6 dim 1 : vector<2x256xf32>, i32 -> vector<2x256xf32>
    %cst = arith.constant 0.000000e+00 : f32
    %27 = vector.shape_cast %19 : vector<1x256xi1> to vector<1x256xi1>
    %28 = vector.broadcast %27 : vector<1x256xi1> to vector<2x256xi1>
    %29 = vector.broadcast %cst : f32 to vector<2x256xf32>
    %30 = arith.select %28, %26, %29 : vector<2x256xi1>, vector<2x256xf32>
    %c255_i32 = arith.constant 255 : i32
    %31 = tpu.dynamic_rotate %0 by %c255_i32 dim 1 : vector<2x256xf32>, i32 -> vector<2x256xf32>
    %cst_7 = arith.constant 0.000000e+00 : f32
    %32 = vector.shape_cast %21 : vector<1x256xi1> to vector<1x256xi1>
    %33 = vector.broadcast %32 : vector<1x256xi1> to vector<2x256xi1>
    %34 = vector.broadcast %cst_7 : f32 to vector<2x256xf32>
    %35 = arith.select %33, %31, %34 : vector<2x256xi1>, vector<2x256xf32>
    %36 = arith.subf %35, %30 : vector<2x256xf32>
    %c16_i32_8 = arith.constant 16 : i32
    %37 = tpu.dynamic_rotate %36 by %c16_i32_8 dim 1 : vector<2x256xf32>, i32 -> vector<2x256xf32>
    %cst_9 = arith.constant 0.000000e+00 : f32
    %38 = vector.shape_cast %23 : vector<1x256xi1> to vector<1x256xi1>
    %39 = vector.broadcast %38 : vector<1x256xi1> to vector<2x256xi1>
    %40 = vector.broadcast %cst_9 : f32 to vector<2x256xf32>
    %41 = arith.select %39, %37, %40 : vector<2x256xi1>, vector<2x256xf32>
    %c240_i32_10 = arith.constant 240 : i32
    %42 = tpu.dynamic_rotate %36 by %c240_i32_10 dim 1 : vector<2x256xf32>, i32 -> vector<2x256xf32>
    %cst_11 = arith.constant 0.000000e+00 : f32
    %43 = vector.shape_cast %25 : vector<1x256xi1> to vector<1x256xi1>
    %44 = vector.broadcast %43 : vector<1x256xi1> to vector<2x256xi1>
    %45 = vector.broadcast %cst_11 : f32 to vector<2x256xf32>
    %46 = arith.select %44, %42, %45 : vector<2x256xi1>, vector<2x256xf32>
    %cst_12 = arith.constant 2.000000e+00 : f32
    %47 = vector.broadcast %cst_12 : f32 to vector<2x256xf32>
    %48 = arith.mulf %47, %36 : vector<2x256xf32>
    %49 = arith.addf %41, %48 : vector<2x256xf32>
    %50 = arith.addf %49, %46 : vector<2x256xf32>
    %c0_13 = arith.constant 0 : index
    %c0_14 = arith.constant 0 : index
    %51 = vector.load %arg2[%c0_13, %c0_14] : memref<2x512xf32, #tpu.memory_space<vmem>>, vector<2x256xf32>
    tpu.vector_store %arg2[%c0_13, %c0_14], %50 {strides = array<i32>} : memref<2x512xf32, #tpu.memory_space<vmem>>, vector<2x256xf32>,
    %cst_15 = arith.constant 2.000000e+00 : f32
    %52 = vector.broadcast %cst_15 : f32 to vector<2x256xf32>
    %53 = arith.mulf %52, %0 : vector<2x256xf32>
    %54 = arith.addf %30, %53 : vector<2x256xf32>
    %55 = arith.addf %54, %35 : vector<2x256xf32>
    %c16_i32_16 = arith.constant 16 : i32
    %56 = tpu.dynamic_rotate %55 by %c16_i32_16 dim 1 : vector<2x256xf32>, i32 -> vector<2x256xf32>
    %cst_17 = arith.constant 0.000000e+00 : f32
    %57 = vector.shape_cast %23 : vector<1x256xi1> to vector<1x256xi1>
    %58 = vector.broadcast %57 : vector<1x256xi1> to vector<2x256xi1>
    %59 = vector.broadcast %cst_17 : f32 to vector<2x256xf32>
    %60 = arith.select %58, %56, %59 : vector<2x256xi1>, vector<2x256xf32>
    %c240_i32_18 = arith.constant 240 : i32
    %61 = tpu.dynamic_rotate %55 by %c240_i32_18 dim 1 : vector<2x256xf32>, i32 -> vector<2x256xf32>
    %cst_19 = arith.constant 0.000000e+00 : f32
    %62 = vector.shape_cast %25 : vector<1x256xi1> to vector<1x256xi1>
    %63 = vector.broadcast %62 : vector<1x256xi1> to vector<2x256xi1>
    %64 = vector.broadcast %cst_19 : f32 to vector<2x256xf32>
    %65 = arith.select %63, %61, %64 : vector<2x256xi1>, vector<2x256xf32>
    %66 = arith.subf %65, %60 : vector<2x256xf32>
    %c0_20 = arith.constant 0 : index
    %c256 = arith.constant 256 : index
    %67 = vector.load %arg2[%c0_20, %c256] : memref<2x512xf32, #tpu.memory_space<vmem>>, vector<2x256xf32>
    tpu.vector_store %arg2[%c0_20, %c256], %66 {strides = array<i32>} : memref<2x512xf32, #tpu.memory_space<vmem>>, vector<2x256xf32>,
    return
  }
  func.func @transform_0(%arg0: i32) -> (i32, i32) {
    %c0_i32 = arith.constant 0 : i32
    %c0_i32_0 = arith.constant 0 : i32
    return %arg0, %c0_i32 : i32, i32
  }
  func.func @transform_1(%arg0: i32) -> (i32, i32) {
    %c0_i32 = arith.constant 0 : i32
    %c0_i32_0 = arith.constant 0 : i32
    return %arg0, %c0_i32 : i32, i32
  }
}

</mosaic_0001>

<llo_original>
// kernel: tpu_custom_call.1
$region0: #{tpu_custom_call.1}
  #allocation0 [shape = 'u32[]', space=smem, size = 0x4, offset = 0x4, fixed_abs, tag = 'smem constant byte address 0x4 - core index']
  #allocation1 [shape = 'u32[72,128]{1,0:T(1,128)}', space=vmem, size = 0x9000, scoped, tag = 'internal scratch']
  %s0 = inlined_call_operand.hbm [shape: f32[2,256], index: 0, kind: input, shape index: {}]
  %s1 = inlined_call_operand.hbm [shape: f32[2,512], index: 1, kind: output, shape index: {}]
  %s2 = sld [smem:[#allocation0]]
  $region18: #{tpu_custom_call.1} parent=0
    _
  %s4 = ssub.s32 1, %s2
  %s5 = scalar_select 0, %s4, %s2
  $region1: #{tpu_custom_call.1} parent=0
    #allocation2 [shape = 'u8[2048]{0}', space=vmem, size = 0x800, scoped, tag = 'input window, operand 0, single buffered']
    #allocation3 [shape = 's32[1]{0}', space=sflag, size = 0x4, scoped, tag = 'scoped memory for tpu_custom_call.1']
    #allocation4 [shape = 's32[1]{0}', space=sflag, size = 0x4, scoped, tag = 'scoped memory for tpu_custom_call.1']
    #allocation5 [shape = 'u8[4096]{0}', space=vmem, size = 0x1000, scoped, tag = 'output window, operand 0, single buffered']
    %6 = vsyncpa [#allocation3], 0
    %7 = vsyncpa [#allocation4], 0
    // Predicated region
    $region2: #{tpu_custom_call.1} parent=1 // pred_check
      _
    $region3: #{tpu_custom_call.1} parent=1 // pred_check_branch
      %9 = sbr.rel (0) target = $region5
    $region4: #{tpu_custom_call.1} parent=1 // pred_region
      %11 = vsyncadd [#allocation3], 0
      %s13 = sshll.u32 %s0, 4
      %s14 = int_to_ptr.hbm [resolvable:$true] %s13
      %s15 = sshll.u32 [#allocation2], 4
      %s16 = int_to_ptr.vmem [resolvable:$true] %s15
      %18 = dma.hbm_to_vmem [thread:$0]  %s14, 64, %s16, [#allocation3]
    $region5: #{tpu_custom_call.1} parent=1 // pred_fallthru
      _
    // Predicated region
    $region6: #{tpu_custom_call.1} parent=1 // pred_check
      _
    $region7: #{tpu_custom_call.1} parent=1 // pred_check_branch
      %20 = sbr.rel (0) target = $region9
    $region8: #{tpu_custom_call.1} parent=1 // pred_region
      %22 = dma.done [#allocation3], 64
    $region9: #{tpu_custom_call.1} parent=1 // pred_fallthru
      _
    %v23 = vld [vmem:[#allocation2] sm:$0xf]
    %v24 = vlaneseq
    %v25 = vand.u32 %v24, 127
    %v26 = vadd.s32 %v25, 128
    %vm27 = vcmp.lt.s32.totalorder %v25, 0
    %v28 = vsub.s32 0, %v25
    %v29 = vsel %vm27, %v28, %v25
    %v30 = vshrl.u32 %v29, 4
    %v31 = vand.u32 %v29, 15
    %v32 = vsub.s32 0, %v31
    %v33 = vsel %vm27, %v32, %v31
    %vm34 = vcmp.lt.s32.totalorder %v26, 0
    %v35 = vsub.s32 0, %v26
    %v36 = vsel %vm34, %v35, %v26
    %v37 = vshrl.u32 %v36, 4
    %v38 = vand.u32 %v36, 15
    %v39 = vsub.s32 0, %v38
    %v40 = vsel %vm34, %v39, %v38
    %vm41 = vcmp.ne.s32.totalorder %v33, 0
    %vm42 = vcmp.ne.s32.totalorder %v40, 0
    %vm43 = vcmp.lt.s32.totalorder %v33, 0
    %vm44 = vcmp.lt.s32.totalorder %v40, 0
    %vm45 = vmand %vm43, %vm41
    %vm46 = vmand %vm44, %vm42
    %v47 = vadd.s32 %v33, 16
    %v48 = vadd.s32 %v40, 16
    %v49 = vsel %vm45, %v47, %v33
    %v50 = vsel %vm46, %v48, %v40
    %vm51 = vcmp.ge.s32.totalorder %v49, 1
    %vm52 = vcmp.ge.s32.totalorder %v50, 1
    %vm53 = vcmp.le.s32.totalorder %v49, 14
    %vm54 = vcmp.le.s32.totalorder %v50, 14
    %vm55 = vcmp.ge.s32.totalorder %v25, 16
    %vm56 = vcmp.ge.s32.totalorder %v26, 16
    %vm57 = vcmp.lt.s32.totalorder %v25, 240
    %vm58 = vcmp.lt.s32.totalorder %v26, 240
    %60 = vst [vmem:[#allocation1] ss:$4 sm:$0xff] %v23
    %v61 = vld.sshfl [vmem:[#allocation1] sm:$0xff pattern:$0x73625140]
    %v62 = vld.sshfl [vmem:[#allocation1 + $0x8] sm:$0xff pattern:$0x73625140]
    %65 = vrot.lane.b32.xlu0 %v61, 1
    %v66 = vpop.permute.xlu0 %65
    %67 = vrot.lane.b32.xlu0 %v62, 1
    %v68 = vpop.permute.xlu0 %67
    %vm69 = vcmp.lt.s32.totalorder %v25, 1
    %v70 = vsel %vm69, %v66, %v68
    %v71 = vsel %vm69, %v68, %v66
    %v72 = vsel %vm51, 1, 0
    %v73 = vsel %vm52, 1, 0
    %vm74 = vcmp.eq.s32.totalorder %v72, 1
    %vm75 = vcmp.eq.s32.totalorder %v73, 1
    %v76 = vsel %vm74, %v71, 0.0
    %v77 = vsel %vm75, %v70, 0.0
    %78 = vst [vmem:[#allocation1] ss:$4 sm:$0xff] %v23
    %v79 = vld.sshfl [vmem:[#allocation1] sm:$0xff pattern:$0x73625140]
    %v80 = vld.sshfl [vmem:[#allocation1 + $0x8] sm:$0xff pattern:$0x73625140]
    %83 = vrot.lane.b32.xlu0 %v79, 127
    %v84 = vpop.permute.xlu0 %83
    %85 = vrot.lane.b32.xlu0 %v80, 127
    %v86 = vpop.permute.xlu0 %85
    %vm87 = vcmp.lt.s32.totalorder %v25, 127
    %v88 = vsel %vm87, %v84, %v86
    %v89 = vsel %vm87, %v86, %v84
    %v90 = vsel %vm53, 1, 0
    %v91 = vsel %vm54, 1, 0
    %vm92 = vcmp.eq.s32.totalorder %v90, 1
    %vm93 = vcmp.eq.s32.totalorder %v91, 1
    %v94 = vsel %vm92, %v88, 0.0
    %v95 = vsel %vm93, %v89, 0.0
    %v96 = vsub.f32 %v94, %v76
    %v97 = vsub.f32 %v95, %v77
    %98 = vrot.lane.b32.xlu0 %v96, 16
    %v99 = vpop.permute.xlu0 %98
    %100 = vrot.lane.b32.xlu0 %v97, 16
    %v101 = vpop.permute.xlu0 %100
    %vm102 = vcmp.lt.s32.totalorder %v25, 16
    %v103 = vsel %vm102, %v99, %v101
    %v104 = vsel %vm102, %v101, %v99
    %v105 = vsel %vm55, 1, 0
    %v106 = vsel %vm56, 1, 0
    %vm107 = vcmp.eq.s32.totalorder %v105, 1
    %vm108 = vcmp.eq.s32.totalorder %v106, 1
    %v109 = vsel %vm107, %v104, 0.0
    %v110 = vsel %vm108, %v103, 0.0
    %111 = vrot.lane.b32.xlu0 %v96, 112
    %v112 = vpop.permute.xlu0 %111
    %113 = vrot.lane.b32.xlu0 %v97, 112
    %v114 = vpop.permute.xlu0 %113
    %vm115 = vcmp.lt.s32.totalorder %v25, 112
    %v116 = vsel %vm115, %v112, %v114
    %v117 = vsel %vm115, %v114, %v112
    %v118 = vsel %vm57, 1, 0
    %v119 = vsel %vm58, 1, 0
    %vm120 = vcmp.eq.s32.totalorder %v118, 1
    %vm121 = vcmp.eq.s32.totalorder %v119, 1
    %v122 = vsel %vm120, %v116, 0.0
    %v123 = vsel %vm121, %v117, 0.0
    %v124 = vmul.f32 %v96, 2.0
    %v125 = vmul.f32 %v97, 2.0
    %v126 = vadd.f32 %v109, %v124
    %v127 = vadd.f32 %v110, %v125
    %v128 = vadd.f32 %v126, %v122
    %v129 = vadd.f32 %v127, %v123
    %v132 = vrot.slane %v129, 6
    %vm133 = vcmask 1041408
    %v134 = vsel %vm133, %v128, %v132
    %136 = vst [vmem:[#allocation5] sm:$0xf] %v134
    %v137 = vmul.f32 %v23, 2.0
    %139 = vst [vmem:[#allocation1] ss:$4 sm:$0xff] %v137
    %v140 = vld.sshfl [vmem:[#allocation1] sm:$0xff pattern:$0x73625140]
    %v141 = vld.sshfl [vmem:[#allocation1 + $0x8] sm:$0xff pattern:$0x73625140]
    %v144 = vadd.f32 %v76, %v140
    %v145 = vadd.f32 %v77, %v141
    %v146 = vadd.f32 %v144, %v94
    %v147 = vadd.f32 %v145, %v95
    %148 = vrot.lane.b32.xlu0 %v146, 16
    %v149 = vpop.permute.xlu0 %148
    %150 = vrot.lane.b32.xlu0 %v147, 16
    %v151 = vpop.permute.xlu0 %150
    %v152 = vsel %vm102, %v149, %v151
    %v153 = vsel %vm102, %v151, %v149
    %v154 = vsel %vm107, %v153, 0.0
    %v155 = vsel %vm108, %v152, 0.0
    %156 = vrot.lane.b32.xlu0 %v146, 112
    %v157 = vpop.permute.xlu0 %156
    %158 = vrot.lane.b32.xlu0 %v147, 112
    %v159 = vpop.permute.xlu0 %158
    %v160 = vsel %vm115, %v157, %v159
    %v161 = vsel %vm115, %v159, %v157
    %v162 = vsel %vm120, %v160, 0.0
    %v163 = vsel %vm121, %v161, 0.0
    %v164 = vsub.f32 %v162, %v154
    %v165 = vsub.f32 %v163, %v155
    %v168 = vrot.slane %v165, 6
    %v169 = vsel %vm133, %v164, %v168
    %171 = vst [vmem:[#allocation5 + $0x4] sm:$0xf] %v169
    // Predicated region
    $region10: #{tpu_custom_call.1} parent=1 // pred_check
      _
    $region11: #{tpu_custom_call.1} parent=1 // pred_check_branch
      %173 = sbr.rel (0) target = $region13
    $region12: #{tpu_custom_call.1} parent=1 // pred_region
      %175 = vsyncadd [#allocation4], 0
      %s177 = sshll.u32 [#allocation5], 4
      %s178 = int_to_ptr.vmem [resolvable:$true] %s177
      %s179 = sshll.u32 %s1, 4
      %s180 = int_to_ptr.hbm [resolvable:$true] %s179
      %182 = dma.vmem_to_hbm [thread:$0]  %s178, 128, %s180, [#allocation4]
    $region13: #{tpu_custom_call.1} parent=1 // pred_fallthru
      _
    // Predicated region
    $region14: #{tpu_custom_call.1} parent=1 // pred_check
      _
    $region15: #{tpu_custom_call.1} parent=1 // pred_check_branch
      %184 = sbr.rel (0) target = $region17
    $region16: #{tpu_custom_call.1} parent=1 // pred_region
      %186 = dma.done [#allocation4], 128
    $region17: #{tpu_custom_call.1} parent=1 // pred_fallthru
      _
    %187 = vsyncpa [#allocation3], 1
    %188 = vsyncpa [#allocation4], 1

</llo_original>
